<compile_context>
chip_gen: v7x
topology: tpu7x:2x2x1
jax: 0.10.0
libtpu: 0.0.40
codegen_flags: <defaults>
</compile_context>

<pallas_src>
import jax
import jax.numpy as jnp
from jax import lax
from jax.experimental import pallas as pl
from jax.experimental.pallas import tpu as pltpu

K_SIZE = 4
STRIDE = 2
PAD = 1
_TAPS = K_SIZE * K_SIZE          # 16
_LANE = 128


def _round_up(x, m):
    return (x + m - 1) // m * m


def _cdiv(a, b):
    return -(-a // b)


def _vmem_config():
    """Per-generation VMEM working-set budget and scoped limit (bytes)."""
    cap = 64 * 1024 * 1024                       # safe fallback (= v7x per-TC VMEM)
    try:
        cap = int(pltpu.get_tpu_info().vmem_capacity_bytes)
    except Exception:
        pass
    budget = int(cap * 0.60)                     # kernel working-set target (double-buffered)
    limit = int(cap * 0.80)                      # headroom left for compiler scratch / spills
    return budget, limit


def _pad_cout(cout):
    # Lane-dense output stores need a multiple of 128.  (256-alignment for the v6e/v7x MXU
    # is only a win when it is free — e.g. Cout already a multiple of 256; padding 384->512
    # would add weight/output DMA without reducing the number of MXU passes.)
    return _round_up(cout, _LANE)


def _im2col(x, k=K_SIZE, s=STRIDE, p=PAD):
    """(N,C,H,W) -> (N*Ho*Wo, C*k*k) patches via static strided slices (no gather).

    Column order is (c, kh, kw), i.e. column = c*16 + kh*4 + kw.
    """
    N, C, H, W = x.shape
    Ho = (H + 2 * p - k) // s + 1
    Wo = (W + 2 * p - k) // s + 1
    xp = jnp.pad(x, ((0, 0), (0, 0), (p, p), (p, p)))
    cols = []
    for kh in range(k):
        for kw in range(k):
            cols.append(xp[:, :, kh:kh + s * (Ho - 1) + 1:s, kw:kw + s * (Wo - 1) + 1:s])
    pat = jnp.stack(cols, axis=-1)              # (N, C, Ho, Wo, 16)
    pat = pat.transpose(0, 2, 3, 1, 4)          # (N, Ho, Wo, C, 16)
    return pat.reshape(N * Ho * Wo, C * k * k), Ho, Wo


# --------------------------- conv (plm_conv) path ---------------------------

def _plain_conv_kernel(p1_ref, w_ref, b_ref, o_ref):
    """out = bias + sum_k dot(p1_k, w_k); f32 output block stays resident across the K axis."""
    @pl.when(pl.program_id(1) == 0)
    def _init():
        o_ref[...] = jnp.broadcast_to(b_ref[...], o_ref.shape)

    o_ref[...] += jnp.dot(p1_ref[...], w_ref[...], preferred_element_type=jnp.float32)


def _masked_conv_kernel(p1_ref, mpat_ref, e_ref, w_ref, b_ref, o_ref):
    """plm_conv blend folded into a single matmul:

         out = dot(p1 * (1 - leak * mask_bcast), W) + b

    (the conv is linear and `leak` is a per-output-pixel scalar, so the second conv over
     x*(1-mask) is never materialized).  Accumulated over the K grid axis into o_ref (f32).
    """
    @pl.when(pl.program_id(1) == 0)
    def _init():
        o_ref[...] = jnp.broadcast_to(b_ref[...], o_ref.shape)

    mp = mpat_ref[...]                                          # (tm, 16) f32
    # leak_area = conv2d(mask, ones(4,4), s=2, p=1) > 0 ; max_pool2d(mask, 2, 2) at output
    # (i, j) == max over taps (1,1),(1,2),(2,1),(2,2) -> flattened columns {5, 6, 9, 10}.
    leak_sum = jnp.sum(mp, axis=-1, keepdims=True)
    col = lax.broadcasted_iota(jnp.int32, mp.shape, 1)
    sel = (col == 5) | (col == 6) | (col == 9) | (col == 10)
    pooled = jnp.max(jnp.where(sel, mp, 0.0), axis=-1, keepdims=True)           # mask >= 0
    leak = jnp.clip(jnp.where(leak_sum > 0.0, 1.0, 0.0) - pooled, 0.0, 1.0)     # (tm, 1)

    # Broadcast the 16 mask taps across this K block's patch columns with a tiny 0/1 matmul.
    leak_b = jnp.dot(leak * mp, e_ref[...], preferred_element_type=jnp.float32)  # (tm, tk)
    pe = (p1_ref[...].astype(jnp.float32) * (1.0 - leak_b)).astype(w_ref.dtype)
    o_ref[...] += jnp.dot(pe, w_ref[...], preferred_element_type=jnp.float32)


def _pick_tiles(M, K, cout_p, op_itemsize, masked, budget, tm_cap=1024, tk_max=None):
    """Pick (tm, tk, m_pad, k_pad): even 128-aligned K split, VMEM-budgeted M tile."""
    # ---- K tile: even, 128-aligned split (or one full-K block) ----
    tk_cap = ((budget // 3) // max(1, 2 * cout_p * op_itemsize)) // _LANE * _LANE
    tk_cap = max(_LANE, tk_cap)
    if tk_max is not None:
        tk_cap = max(_LANE, min(tk_cap, (tk_max // _LANE) * _LANE))
    if K <= tk_cap:
        tk, k_pad = K, K
    else:
        nk = _cdiv(K, tk_cap)
        tk = _round_up(_cdiv(K, nk), _LANE)
        k_pad = nk * tk

    fixed = (2 * tk * cout_p * op_itemsize       # weight blocks (double-buffered)
             + 2 * cout_p * 4)                   # bias
    if masked:
        fixed += 2 * _TAPS * tk * 4              # tap-broadcast matrix blocks

    def var_bytes(t):
        b = (2 * t * tk * op_itemsize            # p1 (im2col) blocks
             + 2 * t * cout_p * 4)               # resident f32 output block (+ writeback)
        if masked:
            b += 2 * t * _TAPS * 4               # mask-patch blocks
            b += 2 * t * tk * 4                  # in-kernel f32 intermediates (leak_b, pe)
        return b

    # ---- M tile: largest multiple of 16 under the budget (16-step, not halving) ----
    tm = min(tm_cap, _round_up(M, 16))
    while tm > 16 and fixed + var_bytes(tm) > budget:
        tm -= 16

    # Prefer a tile that divides M exactly: skips the XLA pad pass over the 4x-expanded
    # im2col array (a full extra HBM read+write the kernel can never hide).
    tm_div = 0
    for t in range(16, tm + 1, 16):
        if M % t == 0:
            tm_div = t
    if 2 * tm_div >= tm:
        return tm_div, tk, M, k_pad
    return tm, tk, _round_up(M, tm), k_pad


def downsample_conv(x, weight, bias, mask=None, *, use_bf16=True, out_layout="NCHW",
                    tm_cap=1024, tk_max=None):
    """Conv2d(Cin->Cout, k=4, s=2, p=1) with plm_conv mask blending (single fused matmul)."""
    N, C, H, W = x.shape
    Cout = weight.shape[0]
    out_dtype = x.dtype
    op_dtype = jnp.bfloat16 if use_bf16 else jnp.float32
    op_isz = jnp.dtype(op_dtype).itemsize
    masked = mask is not None

    budget, limit = _vmem_config()

    # im2col in the MXU operand dtype (bf16 halves this 4x-expanded array's HBM traffic).
    p1, Ho, Wo = _im2col(x.astype(op_dtype))                   # (M, K), K = C*16
    M, K = p1.shape
    cout_p = _pad_cout(Cout)
    tm, tk, m_pad, k_pad = _pick_tiles(M, K, cout_p, op_isz, masked, budget,
                                       tm_cap=tm_cap, tk_max=tk_max)
    if (m_pad, k_pad) != (M, K):
        p1 = jnp.pad(p1, ((0, m_pad - M), (0, k_pad - K)))

    # weight (Cout, C, 4, 4) -> (K, Cout_p), bias -> (1, Cout_p) f32
    w_mat = jnp.pad(weight.reshape(Cout, K).T,
                    ((0, k_pad - K), (0, cout_p - Cout))).astype(op_dtype)
    b_mat = jnp.pad(bias.astype(jnp.float32), (0, cout_p - Cout)).reshape(1, cout_p)

    if masked:
        mpat, _, _ = _im2col(mask.astype(jnp.float32))          # (M, 16)
        if m_pad != M:
            mpat = jnp.pad(mpat, ((0, m_pad - M), (0, 0)))
        # 0/1 tap-broadcast matrix: e[t, j] = 1 iff j % 16 == t (column order is c*16 + t)
        e_mat = (jnp.arange(k_pad)[None, :] % _TAPS ==
                 jnp.arange(_TAPS)[:, None]).astype(jnp.float32)
        kernel = _masked_conv_kernel
        operands = (p1, mpat, e_mat, w_mat, b_mat)
        in_specs = [
            pl.BlockSpec((tm, tk), lambda i, k: (i, k)),        # p1 (im2col of x)
            pl.BlockSpec((tm, _TAPS), lambda i, k: (i, 0)),     # mask patches
            pl.BlockSpec((_TAPS, tk), lambda i, k: (0, k)),     # tap-broadcast matrix
            pl.BlockSpec((tk, cout_p), lambda i, k: (k, 0)),    # weights
            pl.BlockSpec((1, cout_p), lambda i, k: (0, 0)),     # bias
        ]
    else:
        kernel = _plain_conv_kernel
        operands = (p1, w_mat, b_mat)
        in_specs = [
            pl.BlockSpec((tm, tk), lambda i, k: (i, k)),        # p1 (im2col of x)
            pl.BlockSpec((tk, cout_p), lambda i, k: (k, 0)),    # weights
            pl.BlockSpec((1, cout_p), lambda i, k: (0, 0)),     # bias
        ]

    out = pl.pallas_call(
        kernel,
        out_shape=jax.ShapeDtypeStruct((m_pad, cout_p), jnp.float32),
        grid_spec=pltpu.PrefetchScalarGridSpec(
            num_scalar_prefetch=0,
            grid=(m_pad // tm, k_pad // tk),                    # reduction axis last
            in_specs=in_specs,
            out_specs=pl.BlockSpec((tm, cout_p), lambda i, k: (i, 0)),
        ),
        compiler_params=pltpu.CompilerParams(
            dimension_semantics=("parallel", "arbitrary"),
            vmem_limit_bytes=limit,
        ),
    )(*operands)

    out = out[:M, :Cout].astype(out_dtype).reshape(N, Ho, Wo, Cout)
    if out_layout == "NHWC":
        return out                               # skips the extra transpose HBM pass
    return out.transpose(0, 3, 1, 2)


# ------------------------------ avg-pool path -------------------------------

def _avgpool_kernel(x_ref, p_ref, o_ref):
    o_ref[...] = jnp.dot(x_ref[...].astype(jnp.float32), p_ref[...],
                         preferred_element_type=jnp.float32).astype(o_ref.dtype)


def downsample_avgpool(x, *, tile_r=1024):
    """F.avg_pool2d(x, 2, 2): one pass over x.  g = ceil(128/Wo) output rows are packed per
    kernel row (lane-dense stores) and a single (4*g*Wo, g*Wo) 0/1*0.25 pooling matmul does
    both the 2x2 sum and the 1/4 scale."""
    N, C, H, W = x.shape
    Ho, Wo = H // 2, W // 2
    budget, limit = _vmem_config()
    x = x[:, :, :Ho * 2, :Wo * 2]
    R = N * C * Ho

    g = max(1, _cdiv(_LANE, Wo))                 # pack factor for a lane-dense output
    while g > 1 and R % g:
        g -= 1
    R2 = R // g
    row_w, out_w = 4 * g * Wo, g * Wo
    x3 = x.reshape(R2, row_w)                    # row = g consecutive 2x(2*Wo) input blocks

    isz = x3.dtype.itemsize
    sub = 16 if isz < 4 else 8
    fixed = 2 * row_w * out_w * 4                # pooling matrix (double-buffered)

    def var_bytes(t):                            # in/out double-buffers + f32 intermediates
        return 2 * t * row_w * isz + 2 * t * out_w * isz + t * row_w * 4 + t * out_w * 4

    tr = min(_round_up(tile_r, sub), _round_up(R2, sub))
    while tr > sub and fixed + var_bytes(tr) > budget:
        tr -= sub
    tr_div = 0
    for t in range(sub, tr + 1, sub):            # prefer a tile dividing R2 (no pad pass)
        if R2 % t == 0:
            tr_div = t
    if 2 * tr_div >= tr:
        tr, r_pad = tr_div, R2
    else:
        r_pad = _round_up(R2, tr)
    if r_pad != R2:
        x3 = jnp.pad(x3, ((0, r_pad - R2), (0, 0)))

    # Block pooling matrix: input element (j-th packed row, sub-row, col) -> j*Wo + col//2.
    p_idx = jnp.arange(row_w)
    tgt = (p_idx // (4 * Wo)) * Wo + (p_idx % (2 * Wo)) // 2
    pool = (tgt[:, None] == jnp.arange(out_w)[None, :]).astype(jnp.float32) * 0.25

    out = pl.pallas_call(
        _avgpool_kernel,
        out_shape=jax.ShapeDtypeStruct((r_pad, out_w), x.dtype),
        grid_spec=pltpu.PrefetchScalarGridSpec(
            num_scalar_prefetch=0,
            grid=(r_pad // tr,),
            in_specs=[pl.BlockSpec((tr, row_w), lambda i: (i, 0)),
                      pl.BlockSpec((row_w, out_w), lambda i: (0, 0))],
            out_specs=pl.BlockSpec((tr, out_w), lambda i: (i, 0)),
        ),
        compiler_params=pltpu.CompilerParams(
            dimension_semantics=("parallel",),
            vmem_limit_bytes=limit,
        ),
    )(x3, pool)
    return out[:R2].reshape(N, C, Ho, Wo)


# --------------------------------- module ------------------------------------

class Downsample:
    """JAX/Pallas port of the PyTorch Downsample module (forward only)."""

    def __init__(self, in_channels, with_conv, key):
        self.with_conv = with_conv
        if with_conv:
            fan_in = in_channels * K_SIZE * K_SIZE
            bound = 1.0 / (fan_in ** 0.5)
            kw, kb = jax.random.split(key)
            self.weight = jax.random.uniform(
                kw, (in_channels, in_channels, K_SIZE, K_SIZE), jnp.float32, -bound, bound)
            self.bias = jax.random.uniform(kb, (in_channels,), jnp.float32, -bound, bound)

    def __call__(self, x, mask=None, *, use_bf16=True, out_layout="NCHW"):
        if self.with_conv:
            return downsample_conv(x, self.weight, self.bias, mask=mask,
                                   use_bf16=use_bf16, out_layout=out_layout)
        return downsample_avgpool(x)


# ---------------- pure-JAX reference (correctness check only) ----------------

def _ref_downsample_conv(x, weight, bias, mask=None):
    def conv(z):
        y = lax.conv_general_dilated(
            z, weight, (STRIDE, STRIDE), ((PAD, PAD), (PAD, PAD)),
            dimension_numbers=("NCHW", "OIHW", "NCHW"),
            precision=lax.Precision.HIGHEST)
        return y + bias[None, :, None, None]

    if mask is None:
        return conv(x)
    f1 = conv(x)
    f2 = conv(x * (1.0 - mask))
    ones = jnp.ones((1, 1, K_SIZE, K_SIZE), x.dtype)
    leak = lax.conv_general_dilated(
        mask, ones, (STRIDE, STRIDE), ((PAD, PAD), (PAD, PAD)),
        dimension_numbers=("NCHW", "OIHW", "NCHW"),
        precision=lax.Precision.HIGHEST)
    mask_p = lax.reduce_window(mask, -jnp.inf, lax.max, (1, 1, 2, 2), (1, 1, 2, 2), "VALID")
    leak = jnp.where(leak > 0, 1.0, leak)
    leak = jnp.clip(leak - mask_p, 0.0, 1.0)
    return f1 * (1.0 - leak) + f2 * leak


if __name__ == "__main__":
    key = jax.random.PRNGKey(0)
    k_x, k_m, k_p, k_x2 = jax.random.split(key, 4)
    N, C, H, W = 2, 4, 16, 16
    x = jax.random.normal(k_x, (N, C, H, W), jnp.float32)
    mask = (jax.random.uniform(k_m, (N, 1, H, W)) > 0.7).astype(jnp.float32)

    ds = Downsample(C, with_conv=True, key=k_p)
    ref = _ref_downsample_conv(x, ds.weight, ds.bias, mask=mask)

    # masked conv, default bf16 MXU operands (f32 accumulation + f32 blend math)
    out = jax.block_until_ready(ds(x, mask=mask))
    assert out.shape == (N, C, H // 2, W // 2), out.shape
    assert float(jnp.max(jnp.abs(out - ref))) < 1.5e-1

    # masked conv, bit-exact f32 operand mode
    out_f32 = jax.block_until_ready(ds(x, mask=mask, use_bf16=False))
    assert float(jnp.max(jnp.abs(out_f32 - ref))) < 5e-3

    # plain conv (mask=None): dedicated kernel without the leak / blend path
    ref_nm = _ref_downsample_conv(x, ds.weight, ds.bias, mask=None)
    out_nm = jax.block_until_ready(ds(x, mask=None, use_bf16=False))
    assert float(jnp.max(jnp.abs(out_nm - ref_nm))) < 5e-3
    out_nm_bf = jax.block_until_ready(ds(x, mask=None))
    assert float(jnp.max(jnp.abs(out_nm_bf - ref_nm))) < 1.5e-1

    # larger-channel config: forces a multi-block K axis (tk_max) and exercises Cout padding
    C2, H2 = 320, 8
    x2 = jax.random.normal(k_x2, (1, C2, H2, H2), jnp.float32)
    m2 = (jax.random.uniform(k_m, (1, 1, H2, H2)) > 0.5).astype(jnp.float32)
    ds2 = Downsample(C2, with_conv=True, key=k_p)
    refl = _ref_downsample_conv(x2, ds2.weight, ds2.bias, mask=m2)
    outl = jax.block_until_ready(
        downsample_conv(x2, ds2.weight, ds2.bias, mask=m2, use_bf16=False, tk_max=2048))
    assert float(jnp.max(jnp.abs(outl - refl))) < 1e-2
    outl_bf = jax.block_until_ready(
        downsample_conv(x2, ds2.weight, ds2.bias, mask=m2, use_bf16=True, tk_max=2048))
    assert float(jnp.max(jnp.abs(outl_bf - refl))) < 3e-1

    # avg-pool path (with_conv=False), lane-dense packed output
    ds_np = Downsample(C, with_conv=False, key=k_p)
    out3 = jax.block_until_ready(ds_np(x))
    ref3 = x.reshape(N, C, H // 2, 2, W // 2, 2).mean(axis=(3, 5))
    assert float(jnp.max(jnp.abs(out3 - ref3))) < 1e-3

    print("KERNEL_OK")
</pallas_src>

<mosaic_0001>
module attributes {stable_mosaic.version = 11 : i64} {
  func.func @_masked_conv_kernel(%arg0: i32, %arg1: i32, %arg2: memref<128x64xbf16, #tpu.memory_space<vmem>>, %arg3: memref<128x16xf32, #tpu.memory_space<vmem>>, %arg4: memref<16x64xf32, #tpu.memory_space<vmem>>, %arg5: memref<64x128xbf16, #tpu.memory_space<vmem>>, %arg6: memref<1x128xf32, #tpu.memory_space<vmem>>, %arg7: memref<128x128xf32, #tpu.memory_space<vmem>>) attributes {dimension_semantics = [#tpu.dimension_semantics<parallel>, #tpu.dimension_semantics<arbitrary>], iteration_bounds = array<i64: 1, 1>, scalar_prefetch = 0 : i64, scratch_operands = 0 : i64, tpu.core_type = #tpu.core_type<tc>, window_params = [{transform_indices = @transform_0, window_bounds = array<i64: 128, 64>}, {transform_indices = @transform_1, window_bounds = array<i64: 128, 16>}, {transform_indices = @transform_2, window_bounds = array<i64: 16, 64>}, {transform_indices = @transform_3, window_bounds = array<i64: 64, 128>}, {pipeline_mode = #tpu.pipeline_mode<synchronous>, transform_indices = @transform_4, window_bounds = array<i64: 1, 128>}, {transform_indices = @transform_5, window_bounds = array<i64: 128, 128>}]} {
    %c0_i32 = arith.constant 0 : i32
    %0 = arith.cmpi eq, %arg1, %c0_i32 : i32
    %1 = arith.extui %0 : i1 to i32
    %c0_i32_0 = arith.constant 0 : i32
    %2 = arith.cmpi ne, %1, %c0_i32_0 : i32
    scf.if %2 {
      %c0_22 = arith.constant 0 : index
      %c0_23 = arith.constant 0 : index
      %47 = vector.load %arg6[%c0_22, %c0_23] : memref<1x128xf32, #tpu.memory_space<vmem>>, vector<1x128xf32>
      %48 = vector.shape_cast %47 : vector<1x128xf32> to vector<1x128xf32>
      %49 = vector.broadcast %48 : vector<1x128xf32> to vector<128x128xf32>
      %c0_24 = arith.constant 0 : index
      %c0_25 = arith.constant 0 : index
      %50 = vector.load %arg7[%c0_24, %c0_25] : memref<128x128xf32, #tpu.memory_space<vmem>>, vector<128x128xf32>
      tpu.vector_store %arg7[%c0_24, %c0_25], %49 {strides = array<i32>} : memref<128x128xf32, #tpu.memory_space<vmem>>, vector<128x128xf32>,
    } else {
    }
    %c0 = arith.constant 0 : index
    %c0_1 = arith.constant 0 : index
    %3 = vector.load %arg3[%c0, %c0_1] : memref<128x16xf32, #tpu.memory_space<vmem>>, vector<128x16xf32>
    %cst = arith.constant dense<0.000000e+00> : vector<128xf32>
    %4 = vector.multi_reduction <add>, %3, %cst [1] : vector<128x16xf32> to vector<128xf32>
    %5 = vector.shape_cast %4 : vector<128xf32> to vector<128x1xf32>
    %6 = tpu.iota {dimensions = array<i32: 1>} : vector<128x16xi32>
    %c5_i32 = arith.constant 5 : i32
    %7 = vector.broadcast %c5_i32 : i32 to vector<128x16xi32>
    %8 = arith.cmpi eq, %6, %7 : vector<128x16xi32>
    %c6_i32 = arith.constant 6 : i32
    %9 = vector.broadcast %c6_i32 : i32 to vector<128x16xi32>
    %10 = arith.cmpi eq, %6, %9 : vector<128x16xi32>
    %11 = arith.ori %8, %10 : vector<128x16xi1>
    %c9_i32 = arith.constant 9 : i32
    %12 = vector.broadcast %c9_i32 : i32 to vector<128x16xi32>
    %13 = arith.cmpi eq, %6, %12 : vector<128x16xi32>
    %14 = arith.ori %11, %13 : vector<128x16xi1>
    %c10_i32 = arith.constant 10 : i32
    %15 = vector.broadcast %c10_i32 : i32 to vector<128x16xi32>
    %16 = arith.cmpi eq, %6, %15 : vector<128x16xi32>
    %17 = arith.ori %14, %16 : vector<128x16xi1>
    %cst_2 = arith.constant 0.000000e+00 : f32
    %18 = vector.broadcast %cst_2 : f32 to vector<128x16xf32>
    %19 = arith.select %17, %3, %18 : vector<128x16xi1>, vector<128x16xf32>
    %cst_3 = arith.constant dense<0xFF800000> : vector<128xf32>
    %20 = vector.multi_reduction <maximumf>, %19, %cst_3 [1] : vector<128x16xf32> to vector<128xf32>
    %21 = vector.shape_cast %20 : vector<128xf32> to vector<128x1xf32>
    %cst_4 = arith.constant 0.000000e+00 : f32
    %22 = vector.broadcast %cst_4 : f32 to vector<128x1xf32>
    %23 = arith.cmpf ogt, %5, %22 : vector<128x1xf32>
    %cst_5 = arith.constant 1.000000e+00 : f32
    %cst_6 = arith.constant 0.000000e+00 : f32
    %24 = vector.broadcast %cst_5 : f32 to vector<128x1xf32>
    %25 = vector.broadcast %cst_6 : f32 to vector<128x1xf32>
    %26 = arith.select %23, %24, %25 : vector<128x1xi1>, vector<128x1xf32>
    %27 = arith.subf %26, %21 : vector<128x1xf32>
    %cst_7 = arith.constant 0.000000e+00 : f32
    %cst_8 = arith.constant 1.000000e+00 : f32
    %28 = vector.broadcast %cst_7 : f32 to vector<128x1xf32>
    %29 = arith.maximumf %28, %27 : vector<128x1xf32>
    %30 = vector.broadcast %cst_8 : f32 to vector<128x1xf32>
    %31 = arith.minimumf %30, %29 : vector<128x1xf32>
    %32 = vector.broadcast %31 : vector<128x1xf32> to vector<128x16xf32>
    %33 = arith.mulf %32, %3 : vector<128x16xf32>
    %c0_9 = arith.constant 0 : index
    %c0_10 = arith.constant 0 : index
    %34 = vector.load %arg4[%c0_9, %c0_10] : memref<16x64xf32, #tpu.memory_space<vmem>>, vector<16x64xf32>
    %cst_11 = arith.constant dense<0.000000e+00> : vector<128x64xf32>
    %35 = tpu.matmul %33, %34, %cst_11 {dimension_numbers = #tpu.dot_dimension_numbers<[1], [0], [0], [1], [0, 0, 1, 1], [], []>} : vector<128x16xf32>, vector<16x64xf32>, vector<128x64xf32> -> vector<128x64xf32>
    %c0_12 = arith.constant 0 : index
    %c0_13 = arith.constant 0 : index
    %36 = vector.load %arg2[%c0_12, %c0_13] : memref<128x64xbf16, #tpu.memory_space<vmem>>, vector<128x64xbf16>
    %37 = arith.extf %36 : vector<128x64xbf16> to vector<128x64xf32>
    %cst_14 = arith.constant 1.000000e+00 : f32
    %38 = vector.broadcast %cst_14 : f32 to vector<128x64xf32>
    %39 = arith.subf %38, %35 : vector<128x64xf32>
    %40 = arith.mulf %37, %39 : vector<128x64xf32>
    %41 = arith.truncf %40 : vector<128x64xf32> to vector<128x64xbf16>
    %c0_15 = arith.constant 0 : index
    %c0_16 = arith.constant 0 : index
    %42 = vector.load %arg7[%c0_15, %c0_16] : memref<128x128xf32, #tpu.memory_space<vmem>>, vector<128x128xf32>
    %c0_17 = arith.constant 0 : index
    %c0_18 = arith.constant 0 : index
    %43 = vector.load %arg5[%c0_17, %c0_18] : memref<64x128xbf16, #tpu.memory_space<vmem>>, vector<64x128xbf16>
    %cst_19 = arith.constant dense<0.000000e+00> : vector<128x128xf32>
    %44 = tpu.matmul %41, %43, %cst_19 {dimension_numbers = #tpu.dot_dimension_numbers<[1], [0], [0], [1], [0, 0, 1, 1], [], []>} : vector<128x64xbf16>, vector<64x128xbf16>, vector<128x128xf32> -> vector<128x128xf32>
    %45 = arith.addf %42, %44 : vector<128x128xf32>
    %c0_20 = arith.constant 0 : index
    %c0_21 = arith.constant 0 : index
    %46 = vector.load %arg7[%c0_20, %c0_21] : memref<128x128xf32, #tpu.memory_space<vmem>>, vector<128x128xf32>
    tpu.vector_store %arg7[%c0_20, %c0_21], %45 {strides = array<i32>} : memref<128x128xf32, #tpu.memory_space<vmem>>, vector<128x128xf32>,
    return
  }
  func.func @transform_0(%arg0: i32, %arg1: i32) -> (i32, i32) {
    %c0_i32 = arith.constant 0 : i32
    return %arg0, %arg1 : i32, i32
  }
  func.func @transform_1(%arg0: i32, %arg1: i32) -> (i32, i32) {
    %c0_i32 = arith.constant 0 : i32
    %c0_i32_0 = arith.constant 0 : i32
    return %arg0, %c0_i32 : i32, i32
  }
  func.func @transform_2(%arg0: i32, %arg1: i32) -> (i32, i32) {
    %c0_i32 = arith.constant 0 : i32
    %c0_i32_0 = arith.constant 0 : i32
    return %c0_i32, %arg1 : i32, i32
  }
  func.func @transform_3(%arg0: i32, %arg1: i32) -> (i32, i32) {
    %c0_i32 = arith.constant 0 : i32
    %c0_i32_0 = arith.constant 0 : i32
    return %arg1, %c0_i32 : i32, i32
  }
  func.func @transform_4(%arg0: i32, %arg1: i32) -> (i32, i32) {
    %c0_i32 = arith.constant 0 : i32
    %c0_i32_0 = arith.constant 0 : i32
    %c0_i32_1 = arith.constant 0 : i32
    return %c0_i32, %c0_i32_0 : i32, i32
  }
  func.func @transform_5(%arg0: i32, %arg1: i32) -> (i32, i32) {
    %c0_i32 = arith.constant 0 : i32
    %c0_i32_0 = arith.constant 0 : i32
    return %arg0, %c0_i32 : i32, i32
  }
}

</mosaic_0001>

<llo_original>
// kernel: tpu_custom_call.1
$region0: #{tpu_custom_call.1}
  #allocation0 [shape = 'u32[]', space=smem, size = 0x4, offset = 0x4, fixed_abs, tag = 'smem constant byte address 0x4 - core index']
  #allocation1 [shape = 'u32[144,128]{1,0:T(1,128)}', space=vmem, size = 0x12000, scoped, tag = 'internal scratch']
  %s0 = inlined_call_operand.vmem [shape: bf16[128,64], index: 0, kind: input, shape index: {}]
  %s1 = inlined_call_operand.vmem [shape: f32[128,16], index: 1, kind: input, shape index: {}]
  %s2 = inlined_call_operand.vmem [shape: f32[16,64], index: 2, kind: input, shape index: {}]
  %s3 = inlined_call_operand.vmem [shape: bf16[64,128], index: 3, kind: input, shape index: {}]
  %s4 = inlined_call_operand.vmem [shape: f32[1,128], index: 4, kind: input, shape index: {}]
  %s5 = inlined_call_operand.hbm [shape: f32[128,128], index: 5, kind: output, shape index: {}]
  %s6 = sld [smem:[#allocation0]]
  $region34: #{tpu_custom_call.1} parent=0
    _
  %s8 = ssub.s32 1, %s6
  %s9 = scalar_select 0, %s8, %s6
  $region1: #{tpu_custom_call.1} parent=0
    #allocation2 [shape = 'u8[65536]{0}', space=vmem, size = 0x10000, scoped, tag = 'output window, operand 0, single buffered']
    #allocation3 [shape = 's32[1]{0}', space=sflag, size = 0x4, scoped, tag = 'scoped memory for tpu_custom_call.1']
    %10 = vsyncpa [#allocation3], 0
    // Predicated region
    $region2: #{tpu_custom_call.1} parent=1 // pred_check
      _
    $region3: #{tpu_custom_call.1} parent=1 // pred_check_branch
      %12 = sbr.rel (0) target = $region5
    $region4: #{tpu_custom_call.1} parent=1 // pred_region
      _
    $region5: #{tpu_custom_call.1} parent=1 // pred_fallthru
      _
    // Predicated region
    $region6: #{tpu_custom_call.1} parent=1 // pred_check
      _
    $region7: #{tpu_custom_call.1} parent=1 // pred_check_branch
      %14 = sbr.rel (0) target = $region9
    $region8: #{tpu_custom_call.1} parent=1 // pred_region
      _
    $region9: #{tpu_custom_call.1} parent=1 // pred_fallthru
      _
    // Predicated region
    $region10: #{tpu_custom_call.1} parent=1 // pred_check
      _
    $region11: #{tpu_custom_call.1} parent=1 // pred_check_branch
      %16 = sbr.rel (0) target = $region13
    $region12: #{tpu_custom_call.1} parent=1 // pred_region
      _
    $region13: #{tpu_custom_call.1} parent=1 // pred_fallthru
      _
    // Predicated region
    $region14: #{tpu_custom_call.1} parent=1 // pred_check
      _
    $region15: #{tpu_custom_call.1} parent=1 // pred_check_branch
      %18 = sbr.rel (0) target = $region17
    $region16: #{tpu_custom_call.1} parent=1 // pred_region
      _
    $region17: #{tpu_custom_call.1} parent=1 // pred_fallthru
      _
    // Predicated region
    $region18: #{tpu_custom_call.1} parent=1 // pred_check
      _
    $region19: #{tpu_custom_call.1} parent=1 // pred_check_branch
      %20 = sbr.rel (0) target = $region21
    $region20: #{tpu_custom_call.1} parent=1 // pred_region
      _
    $region21: #{tpu_custom_call.1} parent=1 // pred_fallthru
      _
    %p22 = scmp.eq.s32.totalorder 0, 0
    // Predicated region
    $region22: #{tpu_custom_call.1} parent=1 // pred_check
      %p23 = pneg %p22
    $region23: #{tpu_custom_call.1} parent=1 // pred_check_branch
      %25 = sbr.rel (%p23) target = $region25
    $region24: #{tpu_custom_call.1} parent=1 // pred_region
      %v26 = vld [vmem:[%s4] sm:$0x1]
      %v28 = vlaneseq
      %v29 = vshrl.u32 %v28, 7
      %v30 = vsub.s32 0, %v29
      %v31 = vrot.slane %v26, %v30
      %33 = vst [vmem:[#allocation2] sm:$0xff] %v31
      %34 = vst [vmem:[#allocation2 + $0x8] sm:$0xff] %v31
      %35 = vst [vmem:[#allocation2 + $0x10] sm:$0xff] %v31
      %36 = vst [vmem:[#allocation2 + $0x18] sm:$0xff] %v31
      %37 = vst [vmem:[#allocation2 + $0x20] sm:$0xff] %v31
      %38 = vst [vmem:[#allocation2 + $0x28] sm:$0xff] %v31
      %39 = vst [vmem:[#allocation2 + $0x30] sm:$0xff] %v31
      %40 = vst [vmem:[#allocation2 + $0x38] sm:$0xff] %v31
      %41 = vst [vmem:[#allocation2 + $0x40] sm:$0xff] %v31
      %42 = vst [vmem:[#allocation2 + $0x48] sm:$0xff] %v31
      %43 = vst [vmem:[#allocation2 + $0x50] sm:$0xff] %v31
      %44 = vst [vmem:[#allocation2 + $0x58] sm:$0xff] %v31
      %45 = vst [vmem:[#allocation2 + $0x60] sm:$0xff] %v31
      %46 = vst [vmem:[#allocation2 + $0x68] sm:$0xff] %v31
      %47 = vst [vmem:[#allocation2 + $0x70] sm:$0xff] %v31
      %48 = vst [vmem:[#allocation2 + $0x78] sm:$0xff] %v31
    $region25: #{tpu_custom_call.1} parent=1 // pred_fallthru
      _
    %v49 = vld [vmem:[%s1] sm:$0xff]
    %v50 = vld [vmem:[%s1 + $0x8] sm:$0xff]
    %v51 = vld [vmem:[%s1 + $0x10] sm:$0xff]
    %v52 = vld [vmem:[%s1 + $0x18] sm:$0xff]
    %v53 = vld [vmem:[%s1 + $0x20] sm:$0xff]
    %v54 = vld [vmem:[%s1 + $0x28] sm:$0xff]
    %v55 = vld [vmem:[%s1 + $0x30] sm:$0xff]
    %v56 = vld [vmem:[%s1 + $0x38] sm:$0xff]
    %v57 = vld [vmem:[%s1 + $0x40] sm:$0xff]
    %v58 = vld [vmem:[%s1 + $0x48] sm:$0xff]
    %v59 = vld [vmem:[%s1 + $0x50] sm:$0xff]
    %v60 = vld [vmem:[%s1 + $0x58] sm:$0xff]
    %v61 = vld [vmem:[%s1 + $0x60] sm:$0xff]
    %v62 = vld [vmem:[%s1 + $0x68] sm:$0xff]
    %v63 = vld [vmem:[%s1 + $0x70] sm:$0xff]
    %v64 = vld [vmem:[%s1 + $0x78] sm:$0xff]
    %vm65 = vcmask 130048
    %v66 = vsel %vm65, %v49, 0.0
    %67 = vadd.xlane.f32.xlu0 %v66
    %v68 = vpop.xlane.xlu0 %67
    %v69 = vsel %vm65, %v50, 0.0
    %70 = vadd.xlane.f32.xlu0 %v69
    %v71 = vpop.xlane.xlu0 %70
    %v72 = vsel %vm65, %v51, 0.0
    %73 = vadd.xlane.f32.xlu0 %v72
    %v74 = vpop.xlane.xlu0 %73
    %v75 = vsel %vm65, %v52, 0.0
    %76 = vadd.xlane.f32.xlu0 %v75
    %v77 = vpop.xlane.xlu0 %76
    %v78 = vsel %vm65, %v53, 0.0
    %79 = vadd.xlane.f32.xlu0 %v78
    %v80 = vpop.xlane.xlu0 %79
    %v81 = vsel %vm65, %v54, 0.0
    %82 = vadd.xlane.f32.xlu0 %v81
    %v83 = vpop.xlane.xlu0 %82
    %v84 = vsel %vm65, %v55, 0.0
    %85 = vadd.xlane.f32.xlu0 %v84
    %v86 = vpop.xlane.xlu0 %85
    %v87 = vsel %vm65, %v56, 0.0
    %88 = vadd.xlane.f32.xlu0 %v87
    %v89 = vpop.xlane.xlu0 %88
    %v90 = vsel %vm65, %v57, 0.0
    %91 = vadd.xlane.f32.xlu0 %v90
    %v92 = vpop.xlane.xlu0 %91
    %v93 = vsel %vm65, %v58, 0.0
    %94 = vadd.xlane.f32.xlu0 %v93
    %v95 = vpop.xlane.xlu0 %94
    %v96 = vsel %vm65, %v59, 0.0
    %97 = vadd.xlane.f32.xlu0 %v96
    %v98 = vpop.xlane.xlu0 %97
    %v99 = vsel %vm65, %v60, 0.0
    %100 = vadd.xlane.f32.xlu0 %v99
    %v101 = vpop.xlane.xlu0 %100
    %v102 = vsel %vm65, %v61, 0.0
    %103 = vadd.xlane.f32.xlu0 %v102
    %v104 = vpop.xlane.xlu0 %103
    %v105 = vsel %vm65, %v62, 0.0
    %106 = vadd.xlane.f32.xlu0 %v105
    %v107 = vpop.xlane.xlu0 %106
    %v108 = vsel %vm65, %v63, 0.0
    %109 = vadd.xlane.f32.xlu0 %v108
    %v110 = vpop.xlane.xlu0 %109
    %v111 = vsel %vm65, %v64, 0.0
    %112 = vadd.xlane.f32.xlu0 %v111
    %v113 = vpop.xlane.xlu0 %112
    %v114 = vlaneseq
    %v115 = vand.u32 %v114, 127
    %vm116 = vcmp.eq.s32.totalorder %v115, 5
    %vm117 = vcmp.eq.s32.totalorder %v115, 6
    %vm118 = vmor %vm116, %vm117
    %vm119 = vcmp.eq.s32.totalorder %v115, 9
    %vm120 = vmor %vm118, %vm119
    %vm121 = vcmp.eq.s32.totalorder %v115, 10
    %vm122 = vmor %vm120, %vm121
    %v123 = vsel %vm122, %v49, 0.0
    %v124 = vsel %vm122, %v50, 0.0
    %v125 = vsel %vm122, %v51, 0.0
    %v126 = vsel %vm122, %v52, 0.0
    %v127 = vsel %vm122, %v53, 0.0
    %v128 = vsel %vm122, %v54, 0.0
    %v129 = vsel %vm122, %v55, 0.0
    %v130 = vsel %vm122, %v56, 0.0
    %v131 = vsel %vm122, %v57, 0.0
    %v132 = vsel %vm122, %v58, 0.0
    %v133 = vsel %vm122, %v59, 0.0
    %v134 = vsel %vm122, %v60, 0.0
    %v135 = vsel %vm122, %v61, 0.0
    %v136 = vsel %vm122, %v62, 0.0
    %v137 = vsel %vm122, %v63, 0.0
    %v138 = vsel %vm122, %v64, 0.0
    %v139 = vsel %vm65, %v123, -inf
    %140 = vmax.xlane.f32.xlu0 %v139
    %v141 = vpop.xlane.xlu0 %140
    %v142 = vsel %vm65, %v124, -inf
    %143 = vmax.xlane.f32.xlu0 %v142
    %v144 = vpop.xlane.xlu0 %143
    %v145 = vsel %vm65, %v125, -inf
    %146 = vmax.xlane.f32.xlu0 %v145
    %v147 = vpop.xlane.xlu0 %146
    %v148 = vsel %vm65, %v126, -inf
    %149 = vmax.xlane.f32.xlu0 %v148
    %v150 = vpop.xlane.xlu0 %149
    %v151 = vsel %vm65, %v127, -inf
    %152 = vmax.xlane.f32.xlu0 %v151
    %v153 = vpop.xlane.xlu0 %152
    %v154 = vsel %vm65, %v128, -inf
    %155 = vmax.xlane.f32.xlu0 %v154
    %v156 = vpop.xlane.xlu0 %155
    %v157 = vsel %vm65, %v129, -inf
    %158 = vmax.xlane.f32.xlu0 %v157
    %v159 = vpop.xlane.xlu0 %158
    %v160 = vsel %vm65, %v130, -inf
    %161 = vmax.xlane.f32.xlu0 %v160
    %v162 = vpop.xlane.xlu0 %161
    %v163 = vsel %vm65, %v131, -inf
    %164 = vmax.xlane.f32.xlu0 %v163
    %v165 = vpop.xlane.xlu0 %164
    %v166 = vsel %vm65, %v132, -inf
    %167 = vmax.xlane.f32.xlu0 %v166
    %v168 = vpop.xlane.xlu0 %167
    %v169 = vsel %vm65, %v133, -inf
    %170 = vmax.xlane.f32.xlu0 %v169
    %v171 = vpop.xlane.xlu0 %170
    %v172 = vsel %vm65, %v134, -inf
    %173 = vmax.xlane.f32.xlu0 %v172
    %v174 = vpop.xlane.xlu0 %173
    %v175 = vsel %vm65, %v135, -inf
    %176 = vmax.xlane.f32.xlu0 %v175
    %v177 = vpop.xlane.xlu0 %176
    %v178 = vsel %vm65, %v136, -inf
    %179 = vmax.xlane.f32.xlu0 %v178
    %v180 = vpop.xlane.xlu0 %179
    %v181 = vsel %vm65, %v137, -inf
    %182 = vmax.xlane.f32.xlu0 %v181
    %v183 = vpop.xlane.xlu0 %182
    %v184 = vsel %vm65, %v138, -inf
    %185 = vmax.xlane.f32.xlu0 %v184
    %v186 = vpop.xlane.xlu0 %185
    %vm187 = vcmp.gt.f32.partialorder %v68, 0.0
    %vm188 = vcmp.gt.f32.partialorder %v71, 0.0
    %vm189 = vcmp.gt.f32.partialorder %v74, 0.0
    %vm190 = vcmp.gt.f32.partialorder %v77, 0.0
    %vm191 = vcmp.gt.f32.partialorder %v80, 0.0
    %vm192 = vcmp.gt.f32.partialorder %v83, 0.0
    %vm193 = vcmp.gt.f32.partialorder %v86, 0.0
    %vm194 = vcmp.gt.f32.partialorder %v89, 0.0
    %vm195 = vcmp.gt.f32.partialorder %v92, 0.0
    %vm196 = vcmp.gt.f32.partialorder %v95, 0.0
    %vm197 = vcmp.gt.f32.partialorder %v98, 0.0
    %vm198 = vcmp.gt.f32.partialorder %v101, 0.0
    %vm199 = vcmp.gt.f32.partialorder %v104, 0.0
    %vm200 = vcmp.gt.f32.partialorder %v107, 0.0
    %vm201 = vcmp.gt.f32.partialorder %v110, 0.0
    %vm202 = vcmp.gt.f32.partialorder %v113, 0.0
    %v203 = vsel %vm187, 1.0, 0.0
    %v204 = vsel %vm188, 1.0, 0.0
    %v205 = vsel %vm189, 1.0, 0.0
    %v206 = vsel %vm190, 1.0, 0.0
    %v207 = vsel %vm191, 1.0, 0.0
    %v208 = vsel %vm192, 1.0, 0.0
    %v209 = vsel %vm193, 1.0, 0.0
    %v210 = vsel %vm194, 1.0, 0.0
    %v211 = vsel %vm195, 1.0, 0.0
    %v212 = vsel %vm196, 1.0, 0.0
    %v213 = vsel %vm197, 1.0, 0.0
    %v214 = vsel %vm198, 1.0, 0.0
    %v215 = vsel %vm199, 1.0, 0.0
    %v216 = vsel %vm200, 1.0, 0.0
    %v217 = vsel %vm201, 1.0, 0.0
    %v218 = vsel %vm202, 1.0, 0.0
    %v219 = vsub.f32 %v203, %v141
    %v220 = vsub.f32 %v204, %v144
    %v221 = vsub.f32 %v205, %v147
    %v222 = vsub.f32 %v206, %v150
    %v223 = vsub.f32 %v207, %v153
    %v224 = vsub.f32 %v208, %v156
    %v225 = vsub.f32 %v209, %v159
    %v226 = vsub.f32 %v210, %v162
    %v227 = vsub.f32 %v211, %v165
    %v228 = vsub.f32 %v212, %v168
    %v229 = vsub.f32 %v213, %v171
    %v230 = vsub.f32 %v214, %v174
    %v231 = vsub.f32 %v215, %v177
    %v232 = vsub.f32 %v216, %v180
    %v233 = vsub.f32 %v217, %v183
    %v234 = vsub.f32 %v218, %v186
    %v235 = vmax.f32 %v219, 0.0
    %v236 = vmax.f32 %v220, 0.0
    %v237 = vmax.f32 %v221, 0.0
    %v238 = vmax.f32 %v222, 0.0
    %v239 = vmax.f32 %v223, 0.0
    %v240 = vmax.f32 %v224, 0.0
    %v241 = vmax.f32 %v225, 0.0
    %v242 = vmax.f32 %v226, 0.0
    %v243 = vmax.f32 %v227, 0.0
    %v244 = vmax.f32 %v228, 0.0
    %v245 = vmax.f32 %v229, 0.0
    %v246 = vmax.f32 %v230, 0.0
    %v247 = vmax.f32 %v231, 0.0
    %v248 = vmax.f32 %v232, 0.0
    %v249 = vmax.f32 %v233, 0.0
    %v250 = vmax.f32 %v234, 0.0
    %v251 = vmin.f32 %v235, 1.0
    %v252 = vmin.f32 %v236, 1.0
    %v253 = vmin.f32 %v237, 1.0
    %v254 = vmin.f32 %v238, 1.0
    %v255 = vmin.f32 %v239, 1.0
    %v256 = vmin.f32 %v240, 1.0
    %v257 = vmin.f32 %v241, 1.0
    %v258 = vmin.f32 %v242, 1.0
    %v259 = vmin.f32 %v243, 1.0
    %v260 = vmin.f32 %v244, 1.0
    %v261 = vmin.f32 %v245, 1.0
    %v262 = vmin.f32 %v246, 1.0
    %v263 = vmin.f32 %v247, 1.0
    %v264 = vmin.f32 %v248, 1.0
    %v265 = vmin.f32 %v249, 1.0
    %v266 = vmin.f32 %v250, 1.0
    %v267 = vmul.f32 %v251, %v49
    %v268 = vmul.f32 %v252, %v50
    %v269 = vmul.f32 %v253, %v51
    %v270 = vmul.f32 %v254, %v52
    %v271 = vmul.f32 %v255, %v53
    %v272 = vmul.f32 %v256, %v54
    %v273 = vmul.f32 %v257, %v55
    %v274 = vmul.f32 %v258, %v56
    %v275 = vmul.f32 %v259, %v57
    %v276 = vmul.f32 %v260, %v58
    %v277 = vmul.f32 %v261, %v59
    %v278 = vmul.f32 %v262, %v60
    %v279 = vmul.f32 %v263, %v61
    %v280 = vmul.f32 %v264, %v62
    %v281 = vmul.f32 %v265, %v63
    %v282 = vmul.f32 %v266, %v64
    %v283 = vld [vmem:[%s2] sm:$0xff]
    %v284 = vld [vmem:[%s2 + $0x8] sm:$0xff]
    %v286 = vsel %vm65, %v267, 0
    %v289 = vsel %vm65, %v268, 0
    %v292 = vsel %vm65, %v269, 0
    %v295 = vsel %vm65, %v270, 0
    %v298 = vsel %vm65, %v271, 0
    %v301 = vsel %vm65, %v272, 0
    %v304 = vsel %vm65, %v273, 0
    %v307 = vsel %vm65, %v274, 0
    %v310 = vsel %vm65, %v275, 0
    %v313 = vsel %vm65, %v276, 0
    %v316 = vsel %vm65, %v277, 0
    %v319 = vsel %vm65, %v278, 0
    %v322 = vsel %vm65, %v279, 0
    %v325 = vsel %vm65, %v280, 0
    %v328 = vsel %vm65, %v281, 0
    %v331 = vsel %vm65, %v282, 0
    %333 = vmatprep.subr.mxu0 0.0
    %334 = vmatpush1.msra.mxu0 %v283
    %335 = vmatprep.subr.mxu0 0.0
    %336 = vmatpush1.msra.mxu0 %v284
    %337 = vmatprep.subr.mxu0 0.0
    %338 = vmatpush1.msra.mxu0 0.0
    %339 = vmatprep.subr.mxu0 0.0
    %340 = vmatpush1.msra.mxu0 0.0
    %341 = vmatprep.subr.mxu0 0.0
    %342 = vmatpush1.msra.mxu0 0.0
    %343 = vmatprep.subr.mxu0 0.0
    %344 = vmatpush1.msra.mxu0 0.0
    %345 = vmatprep.subr.mxu0 0.0
    %346 = vmatpush1.msra.mxu0 0.0
    %347 = vmatprep.subr.mxu0 0.0
    %348 = vmatpush1.msra.mxu0 0.0
    %349 = vmatprep.subr.mxu0 0.0
    %350 = vmatpush1.msra.mxu0 0.0
    %351 = vmatprep.subr.mxu0 0.0
    %352 = vmatpush1.msra.mxu0 0.0
    %353 = vmatprep.subr.mxu0 0.0
    %354 = vmatpush1.msra.mxu0 0.0
    %355 = vmatprep.subr.mxu0 0.0
    %356 = vmatpush1.msra.mxu0 0.0
    %357 = vmatprep.subr.mxu0 0.0
    %358 = vmatpush1.msra.mxu0 0.0
    %359 = vmatprep.subr.mxu0 0.0
    %360 = vmatpush1.msra.mxu0 0.0
    %361 = vmatprep.subr.mxu0 0.0
    %362 = vmatpush1.msra.mxu0 0.0
    %363 = vmatprep.subr.mxu0 0.0
    %364 = vmatpush1.msra.mxu0 0.0
    %365 = vmatprep.subr.mxu0 0.0
    %366 = vmatpush1.msra.mxu0 0.0
    %367 = vmatprep.subr.mxu0 0.0
    %368 = vmatpush1.msra.mxu0 0.0
    %369 = vmatprep.subr.mxu0 0.0
    %370 = vmatpush1.msra.mxu0 0.0
    %371 = vmatprep.subr.mxu0 0.0
    %372 = vmatpush1.msra.mxu0 0.0
    %373 = vmatprep.subr.mxu0 0.0
    %374 = vmatpush1.msra.mxu0 0.0
    %375 = vmatprep.subr.mxu0 0.0
    %376 = vmatpush1.msra.mxu0 0.0
    %377 = vmatprep.subr.mxu0 0.0
    %378 = vmatpush1.msra.mxu0 0.0
    %379 = vmatprep.subr.mxu0 0.0
    %380 = vmatpush1.msra.mxu0 0.0
    %381 = vmatprep.subr.mxu0 0.0
    %382 = vmatpush1.msra.mxu0 0.0
    %383 = vmatprep.subr.mxu0 0.0
    %384 = vmatpush1.msra.mxu0 0.0
    %385 = vmatprep.subr.mxu0 0.0
    %386 = vmatpush1.msra.mxu0 0.0
    %387 = vmatprep.subr.mxu0 0.0
    %388 = vmatpush1.msra.mxu0 0.0
    %389 = vmatprep.subr.mxu0 0.0
    %390 = vmatpush1.msra.mxu0 0.0
    %391 = vmatprep.subr.mxu0 0.0
    %392 = vmatpush1.msra.mxu0 0.0
    %393 = vmatprep.subr.mxu0 0.0
    %394 = vmatpush1.msra.mxu0 0.0
    %395 = vmatprep.subr.mxu0 0.0
    %396 = vmatpush1.msra.mxu0 0.0
    %397 = vmatprep.mubr.f32.mxu0 0.0
    %398 = vmatmul.mubr.f32.gmra.mrb[0].mxu0 %v286
    %v399 = vpop.f32.mrb[0].mxu0
    %v400 = vadd.f32 0.0, %v399
    %v401 = vpop.f32.mrb[0].mxu0
    %402 = vmatprep.mubr.f32.mxu0 0.0
    %403 = vmatmul.mubr.f32.gmra.mrb[0].mxu0 %v289
    %v404 = vpop.f32.mrb[0].mxu0
    %v405 = vadd.f32 0.0, %v404
    %v406 = vpop.f32.mrb[0].mxu0
    %407 = vmatprep.mubr.f32.mxu0 0.0
    %408 = vmatmul.mubr.f32.gmra.mrb[0].mxu0 %v292
    %v409 = vpop.f32.mrb[0].mxu0
    %v410 = vadd.f32 0.0, %v409
    %v411 = vpop.f32.mrb[0].mxu0
    %412 = vmatprep.mubr.f32.mxu0 0.0
    %413 = vmatmul.mubr.f32.gmra.mrb[0].mxu0 %v295
    %v414 = vpop.f32.mrb[0].mxu0
    %v415 = vadd.f32 0.0, %v414
    %v416 = vpop.f32.mrb[0].mxu0
    %417 = vmatprep.mubr.f32.mxu0 0.0
    %418 = vmatmul.mubr.f32.gmra.mrb[0].mxu0 %v298
    %v419 = vpop.f32.mrb[0].mxu0
    %v420 = vadd.f32 0.0, %v419
    %v421 = vpop.f32.mrb[0].mxu0
    %422 = vmatprep.mubr.f32.mxu0 0.0
    %423 = vmatmul.mubr.f32.gmra.mrb[0].mxu0 %v301
    %v424 = vpop.f32.mrb[0].mxu0
    %v425 = vadd.f32 0.0, %v424
    %v426 = vpop.f32.mrb[0].mxu0
    %427 = vmatprep.mubr.f32.mxu0 0.0
    %428 = vmatmul.mubr.f32.gmra.mrb[0].mxu0 %v304
    %v429 = vpop.f32.mrb[0].mxu0
    %v430 = vadd.f32 0.0, %v429
    %v431 = vpop.f32.mrb[0].mxu0
    %432 = vmatprep.mubr.f32.mxu0 0.0
    %433 = vmatmul.mubr.f32.gmra.mrb[0].mxu0 %v307
    %v434 = vpop.f32.mrb[0].mxu0
    %v435 = vadd.f32 0.0, %v434
    %v436 = vpop.f32.mrb[0].mxu0
    %437 = vmatprep.mubr.f32.mxu0 0.0
    %438 = vmatmul.mubr.f32.gmra.mrb[0].mxu0 %v310
    %v439 = vpop.f32.mrb[0].mxu0
    %v440 = vadd.f32 0.0, %v439
    %v441 = vpop.f32.mrb[0].mxu0
    %442 = vmatprep.mubr.f32.mxu0 0.0
    %443 = vmatmul.mubr.f32.gmra.mrb[0].mxu0 %v313
    %v444 = vpop.f32.mrb[0].mxu0
    %v445 = vadd.f32 0.0, %v444
    %v446 = vpop.f32.mrb[0].mxu0
    %447 = vmatprep.mubr.f32.mxu0 0.0
    %448 = vmatmul.mubr.f32.gmra.mrb[0].mxu0 %v316
    %v449 = vpop.f32.mrb[0].mxu0
    %v450 = vadd.f32 0.0, %v449
    %v451 = vpop.f32.mrb[0].mxu0
    %452 = vmatprep.mubr.f32.mxu0 0.0
    %453 = vmatmul.mubr.f32.gmra.mrb[0].mxu0 %v319
    %v454 = vpop.f32.mrb[0].mxu0
    %v455 = vadd.f32 0.0, %v454
    %v456 = vpop.f32.mrb[0].mxu0
    %457 = vmatprep.mubr.f32.mxu0 0.0
    %458 = vmatmul.mubr.f32.gmra.mrb[0].mxu0 %v322
    %v459 = vpop.f32.mrb[0].mxu0
    %v460 = vadd.f32 0.0, %v459
    %v461 = vpop.f32.mrb[0].mxu0
    %462 = vmatprep.mubr.f32.mxu0 0.0
    %463 = vmatmul.mubr.f32.gmra.mrb[0].mxu0 %v325
    %v464 = vpop.f32.mrb[0].mxu0
    %v465 = vadd.f32 0.0, %v464
    %v466 = vpop.f32.mrb[0].mxu0
    %467 = vmatprep.mubr.f32.mxu0 0.0
    %468 = vmatmul.mubr.f32.gmra.mrb[0].mxu0 %v328
    %v469 = vpop.f32.mrb[0].mxu0
    %v470 = vadd.f32 0.0, %v469
    %v471 = vpop.f32.mrb[0].mxu0
    %472 = vmatprep.mubr.f32.mxu0 0.0
    %473 = vmatmul.mubr.f32.gmra.mrb[0].mxu0 %v331
    %v474 = vpop.f32.mrb[0].mxu0
    %v475 = vadd.f32 0.0, %v474
    %v476 = vpop.f32.mrb[0].mxu0
    %477 = vdwg.mxu0
    %v478 = vld [vmem:[%s0] sm:$0xf]
    %v479 = vld [vmem:[%s0 + $0x4] sm:$0xf]
    %v480 = vld [vmem:[%s0 + $0x8] sm:$0xf]
    %v481 = vld [vmem:[%s0 + $0xc] sm:$0xf]
    %v482 = vld [vmem:[%s0 + $0x10] sm:$0xf]
    %v483 = vld [vmem:[%s0 + $0x14] sm:$0xf]
    %v484 = vld [vmem:[%s0 + $0x18] sm:$0xf]
    %v485 = vld [vmem:[%s0 + $0x1c] sm:$0xf]
    %v486 = vld [vmem:[%s0 + $0x20] sm:$0xf]
    %v487 = vld [vmem:[%s0 + $0x24] sm:$0xf]
    %v488 = vld [vmem:[%s0 + $0x28] sm:$0xf]
    %v489 = vld [vmem:[%s0 + $0x2c] sm:$0xf]
    %v490 = vld [vmem:[%s0 + $0x30] sm:$0xf]
    %v491 = vld [vmem:[%s0 + $0x34] sm:$0xf]
    %v492 = vld [vmem:[%s0 + $0x38] sm:$0xf]
    %v493 = vld [vmem:[%s0 + $0x3c] sm:$0xf]
    %v494 = vunpack.c.l.bf16 %v478
    %v495 = vunpack.c.l.bf16 %v479
    %v496 = vunpack.c.l.bf16 %v480
    %v497 = vunpack.c.l.bf16 %v481
    %v498 = vunpack.c.l.bf16 %v482
    %v499 = vunpack.c.l.bf16 %v483
    %v500 = vunpack.c.l.bf16 %v484
    %v501 = vunpack.c.l.bf16 %v485
    %v502 = vunpack.c.l.bf16 %v486
    %v503 = vunpack.c.l.bf16 %v487
    %v504 = vunpack.c.l.bf16 %v488
    %v505 = vunpack.c.l.bf16 %v489
    %v506 = vunpack.c.l.bf16 %v490
    %v507 = vunpack.c.l.bf16 %v491
    %v508 = vunpack.c.l.bf16 %v492
    %v509 = vunpack.c.l.bf16 %v493
    %v510 = vsub.f32 1.0, %v400
    %v511 = vsub.f32 1.0, %v405
    %v512 = vsub.f32 1.0, %v410
    %v513 = vsub.f32 1.0, %v415
    %v514 = vsub.f32 1.0, %v420
    %v515 = vsub.f32 1.0, %v425
    %v516 = vsub.f32 1.0, %v430
    %v517 = vsub.f32 1.0, %v435
    %v518 = vsub.f32 1.0, %v440
    %v519 = vsub.f32 1.0, %v445
    %v520 = vsub.f32 1.0, %v450
    %v521 = vsub.f32 1.0, %v455
    %v522 = vsub.f32 1.0, %v460
    %v523 = vsub.f32 1.0, %v465
    %v524 = vsub.f32 1.0, %v470
    %v525 = vsub.f32 1.0, %v475
    %v526 = vmul.f32 %v494, %v510
    %v527 = vmul.f32 %v495, %v511
    %v528 = vmul.f32 %v496, %v512
    %v529 = vmul.f32 %v497, %v513
    %v530 = vmul.f32 %v498, %v514
    %v531 = vmul.f32 %v499, %v515
    %v532 = vmul.f32 %v500, %v516
    %v533 = vmul.f32 %v501, %v517
    %v534 = vmul.f32 %v502, %v518
    %v535 = vmul.f32 %v503, %v519
    %v536 = vmul.f32 %v504, %v520
    %v537 = vmul.f32 %v505, %v521
    %v538 = vmul.f32 %v506, %v522
    %v539 = vmul.f32 %v507, %v523
    %v540 = vmul.f32 %v508, %v524
    %v541 = vmul.f32 %v509, %v525
    %v542 = vpack.c.bf16 %v527, %v526
    %v543 = vpack.c.bf16 %v529, %v528
    %v544 = vpack.c.bf16 %v531, %v530
    %v545 = vpack.c.bf16 %v533, %v532
    %v546 = vpack.c.bf16 %v535, %v534
    %v547 = vpack.c.bf16 %v537, %v536
    %v548 = vpack.c.bf16 %v539, %v538
    %v549 = vpack.c.bf16 %v541, %v540
    %v550 = vld [vmem:[#allocation2] sm:$0xff]
    %v551 = vld [vmem:[#allocation2 + $0x8] sm:$0xff]
    %v552 = vld [vmem:[#allocation2 + $0x10] sm:$0xff]
    %v553 = vld [vmem:[#allocation2 + $0x18] sm:$0xff]
    %v554 = vld [vmem:[#allocation2 + $0x20] sm:$0xff]
    %v555 = vld [vmem:[#allocation2 + $0x28] sm:$0xff]
    %v556 = vld [vmem:[#allocation2 + $0x30] sm:$0xff]
    %v557 = vld [vmem:[#allocation2 + $0x38] sm:$0xff]
    %v558 = vld [vmem:[#allocation2 + $0x40] sm:$0xff]
    %v559 = vld [vmem:[#allocation2 + $0x48] sm:$0xff]
    %v560 = vld [vmem:[#allocation2 + $0x50] sm:$0xff]
    %v561 = vld [vmem:[#allocation2 + $0x58] sm:$0xff]
    %v562 = vld [vmem:[#allocation2 + $0x60] sm:$0xff]
    %v563 = vld [vmem:[#allocation2 + $0x68] sm:$0xff]
    %v564 = vld [vmem:[#allocation2 + $0x70] sm:$0xff]
    %v565 = vld [vmem:[#allocation2 + $0x78] sm:$0xff]
    %v566 = vld [vmem:[%s3] sm:$0xf]
    %v567 = vld [vmem:[%s3 + $0x4] sm:$0xf]
    %v568 = vld [vmem:[%s3 + $0x8] sm:$0xf]
    %v569 = vld [vmem:[%s3 + $0xc] sm:$0xf]
    %v570 = vld [vmem:[%s3 + $0x10] sm:$0xf]
    %v571 = vld [vmem:[%s3 + $0x14] sm:$0xf]
    %v572 = vld [vmem:[%s3 + $0x18] sm:$0xf]
    %v573 = vld [vmem:[%s3 + $0x1c] sm:$0xf]
    %v582 = vunpack.c.l.b16 %v566
    %v583 = vunpack.c.l.b16 %v567
    %v584 = vunpack.c.l.b16 %v568
    %v585 = vunpack.c.l.b16 %v569
    %v586 = vunpack.c.l.b16 %v570
    %v587 = vunpack.c.l.b16 %v571
    %v588 = vunpack.c.l.b16 %v572
    %v589 = vunpack.c.l.b16 %v573
    %v590 = vpack.c.b16 %v583, %v582
    %v591 = vpack.c.b16 %v585, %v584
    %v592 = vpack.c.b16 %v587, %v586
    %v593 = vpack.c.b16 %v589, %v588
    %vm598 = vcmask 523264
    %v600 = vsel %vm598, %v542, 0
    %v603 = vsel %vm598, %v543, 0
    %v606 = vsel %vm598, %v544, 0
    %v609 = vsel %vm598, %v545, 0
    %v612 = vsel %vm598, %v546, 0
    %v615 = vsel %vm598, %v547, 0
    %v618 = vsel %vm598, %v548, 0
    %v621 = vsel %vm598, %v549, 0
    %623 = vmatprep.subr.bf16.mxu0 0
    %624 = vmatpush1.bf16.msra.mxu0 %v590
    %625 = vmatprep.subr.bf16.mxu0 0
    %626 = vmatpush1.bf16.msra.mxu0 %v591
    %627 = vmatprep.subr.bf16.mxu0 0
    %628 = vmatpush1.bf16.msra.mxu0 %v592
    %629 = vmatprep.subr.bf16.mxu0 0
    %630 = vmatpush1.bf16.msra.mxu0 %v593
    %631 = vmatprep.subr.bf16.mxu0 0
    %632 = vmatpush1.bf16.msra.mxu0 0
    %633 = vmatprep.subr.bf16.mxu0 0
    %634 = vmatpush1.bf16.msra.mxu0 0
    %635 = vmatprep.subr.bf16.mxu0 0
    %636 = vmatpush1.bf16.msra.mxu0 0
    %637 = vmatprep.subr.bf16.mxu0 0
    %638 = vmatpush1.bf16.msra.mxu0 0
    %639 = vmatprep.subr.bf16.mxu0 0
    %640 = vmatpush1.bf16.msra.mxu0 0
    %641 = vmatprep.subr.bf16.mxu0 0
    %642 = vmatpush1.bf16.msra.mxu0 0
    %643 = vmatprep.subr.bf16.mxu0 0
    %644 = vmatpush1.bf16.msra.mxu0 0
    %645 = vmatprep.subr.bf16.mxu0 0
    %646 = vmatpush1.bf16.msra.mxu0 0
    %647 = vmatprep.subr.bf16.mxu0 0
    %648 = vmatpush1.bf16.msra.mxu0 0
    %649 = vmatprep.subr.bf16.mxu0 0
    %650 = vmatpush1.bf16.msra.mxu0 0
    %651 = vmatprep.subr.bf16.mxu0 0
    %652 = vmatpush1.bf16.msra.mxu0 0
    %653 = vmatprep.subr.bf16.mxu0 0
    %654 = vmatpush1.bf16.msra.mxu0 0
    %655 = vmatprep.mubr.bf16.mxu0 0
    %656 = vmatmul.mubr.bf16.gmra.mrb[0].mxu0 %v600
    %v657 = vpop.f32.mrb[0].mxu0
    %v658 = vadd.f32 0.0, %v657
    %v659 = vpop.f32.mrb[0].mxu0
    %v660 = vpop.f32.mrb[0].mxu0
    %v661 = vadd.f32 0.0, %v660
    %v662 = vpop.f32.mrb[0].mxu0
    %663 = vmatprep.mubr.bf16.mxu0 0
    %664 = vmatmul.mubr.bf16.gmra.mrb[0].mxu0 %v603
    %v665 = vpop.f32.mrb[0].mxu0
    %v666 = vadd.f32 0.0, %v665
    %v667 = vpop.f32.mrb[0].mxu0
    %v668 = vpop.f32.mrb[0].mxu0
    %v669 = vadd.f32 0.0, %v668
    %v670 = vpop.f32.mrb[0].mxu0
    %671 = vmatprep.mubr.bf16.mxu0 0
    %672 = vmatmul.mubr.bf16.gmra.mrb[0].mxu0 %v606
    %v673 = vpop.f32.mrb[0].mxu0
    %v674 = vadd.f32 0.0, %v673
    %v675 = vpop.f32.mrb[0].mxu0
    %v676 = vpop.f32.mrb[0].mxu0
    %v677 = vadd.f32 0.0, %v676
    %v678 = vpop.f32.mrb[0].mxu0
    %679 = vmatprep.mubr.bf16.mxu0 0
    %680 = vmatmul.mubr.bf16.gmra.mrb[0].mxu0 %v609
    %v681 = vpop.f32.mrb[0].mxu0
    %v682 = vadd.f32 0.0, %v681
    %v683 = vpop.f32.mrb[0].mxu0
    %v684 = vpop.f32.mrb[0].mxu0
    %v685 = vadd.f32 0.0, %v684
    %v686 = vpop.f32.mrb[0].mxu0
    %687 = vmatprep.mubr.bf16.mxu0 0
    %688 = vmatmul.mubr.bf16.gmra.mrb[0].mxu0 %v612
    %v689 = vpop.f32.mrb[0].mxu0
    %v690 = vadd.f32 0.0, %v689
    %v691 = vpop.f32.mrb[0].mxu0
    %v692 = vpop.f32.mrb[0].mxu0
    %v693 = vadd.f32 0.0, %v692
    %v694 = vpop.f32.mrb[0].mxu0
    %695 = vmatprep.mubr.bf16.mxu0 0
    %696 = vmatmul.mubr.bf16.gmra.mrb[0].mxu0 %v615
    %v697 = vpop.f32.mrb[0].mxu0
    %v698 = vadd.f32 0.0, %v697
    %v699 = vpop.f32.mrb[0].mxu0
    %v700 = vpop.f32.mrb[0].mxu0
    %v701 = vadd.f32 0.0, %v700
    %v702 = vpop.f32.mrb[0].mxu0
    %703 = vmatprep.mubr.bf16.mxu0 0
    %704 = vmatmul.mubr.bf16.gmra.mrb[0].mxu0 %v618
    %v705 = vpop.f32.mrb[0].mxu0
    %v706 = vadd.f32 0.0, %v705
    %v707 = vpop.f32.mrb[0].mxu0
    %v708 = vpop.f32.mrb[0].mxu0
    %v709 = vadd.f32 0.0, %v708
    %v710 = vpop.f32.mrb[0].mxu0
    %711 = vmatprep.mubr.bf16.mxu0 0
    %712 = vmatmul.mubr.bf16.gmra.mrb[0].mxu0 %v621
    %v713 = vpop.f32.mrb[0].mxu0
    %v714 = vadd.f32 0.0, %v713
    %v715 = vpop.f32.mrb[0].mxu0
    %v716 = vpop.f32.mrb[0].mxu0
    %v717 = vadd.f32 0.0, %v716
    %v718 = vpop.f32.mrb[0].mxu0
    %719 = vdwg.mxu0
    %v720 = vadd.f32 %v550, %v658
    %v721 = vadd.f32 %v551, %v661
    %v722 = vadd.f32 %v552, %v666
    %v723 = vadd.f32 %v553, %v669
    %v724 = vadd.f32 %v554, %v674
    %v725 = vadd.f32 %v555, %v677
    %v726 = vadd.f32 %v556, %v682
    %v727 = vadd.f32 %v557, %v685
    %v728 = vadd.f32 %v558, %v690
    %v729 = vadd.f32 %v559, %v693
    %v730 = vadd.f32 %v560, %v698
    %v731 = vadd.f32 %v561, %v701
    %v732 = vadd.f32 %v562, %v706
    %v733 = vadd.f32 %v563, %v709
    %v734 = vadd.f32 %v564, %v714
    %v735 = vadd.f32 %v565, %v717
    %736 = vst [vmem:[#allocation2] sm:$0xff] %v720
    %737 = vst [vmem:[#allocation2 + $0x8] sm:$0xff] %v721
    %738 = vst [vmem:[#allocation2 + $0x10] sm:$0xff] %v722
    %739 = vst [vmem:[#allocation2 + $0x18] sm:$0xff] %v723
    %740 = vst [vmem:[#allocation2 + $0x20] sm:$0xff] %v724
    %741 = vst [vmem:[#allocation2 + $0x28] sm:$0xff] %v725
    %742 = vst [vmem:[#allocation2 + $0x30] sm:$0xff] %v726
    %743 = vst [vmem:[#allocation2 + $0x38] sm:$0xff] %v727
    %744 = vst [vmem:[#allocation2 + $0x40] sm:$0xff] %v728
    %745 = vst [vmem:[#allocation2 + $0x48] sm:$0xff] %v729
    %746 = vst [vmem:[#allocation2 + $0x50] sm:$0xff] %v730
    %747 = vst [vmem:[#allocation2 + $0x58] sm:$0xff] %v731
    %748 = vst [vmem:[#allocation2 + $0x60] sm:$0xff] %v732
    %749 = vst [vmem:[#allocation2 + $0x68] sm:$0xff] %v733
    %750 = vst [vmem:[#allocation2 + $0x70] sm:$0xff] %v734
    %751 = vst [vmem:[#allocation2 + $0x78] sm:$0xff] %v735
    // Predicated region
    $region26: #{tpu_custom_call.1} parent=1 // pred_check
      _
    $region27: #{tpu_custom_call.1} parent=1 // pred_check_branch
      %753 = sbr.rel (0) target = $region29
    $region28: #{tpu_custom_call.1} parent=1 // pred_region
      %s755 = ssub.s32 2048, 2048
      %756 = vsyncadd [#allocation3], %s755
      %s757 = sshll.u32 [#allocation2], 4
      %s758 = int_to_ptr.vmem [resolvable:$true] %s757
      %763 = dma.vmem_to_hbm [thread:$0]  %s758, 2048, %s5, [#allocation3], 128, 128, 8
    $region29: #{tpu_custom_call.1} parent=1 // pred_fallthru
      _
    // Predicated region
    $region30: #{tpu_custom_call.1} parent=1 // pred_check
      _
    $region31: #{tpu_custom_call.1} parent=1 // pred_check_branch
      %765 = sbr.rel (0) target = $region33
    $region32: #{tpu_custom_call.1} parent=1 // pred_region
      %766 = dma.done [#allocation3], 2048
    $region33: #{tpu_custom_call.1} parent=1 // pred_fallthru
      _
    %767 = vsyncpa [#allocation3], 1

</llo_original>
